<compile_context>
chip_gen: v7x
topology: tpu7x:2x2x1
jax: 0.10.0
libtpu: 0.0.40
codegen_flags: <defaults>
</compile_context>

<pallas_src>
import jax
import jax.numpy as jnp
from jax import lax
from jax.experimental import pallas as pl
from jax.experimental.pallas import tpu as pltpu


def seg2cls_kernel(x_ref, wt_ref, b_ref, o_ref, acc_ref):
    """One (parallel-split, pixel-tile) grid cell.

    x_ref:   (N, C, T)   pixel tile; pixels on the lane axis
    wt_ref:  (K, C)      1x1-conv weight, pre-transposed
    b_ref:   (K, 1)      bias (broadcasts over lanes)
    o_ref:   (1, K, N)   per-split output block (written once, at the last tile)
    acc_ref: (K, N) f32  VMEM accumulator, resident across the tile sweep
    """
    t = pl.program_id(1)
    n_tiles = pl.num_programs(1)

    @pl.when(t == 0)
    def _init():
        acc_ref[...] = jnp.zeros_like(acc_ref)

    wt = wt_ref[...]                    # (K, C)
    b = b_ref[...]                      # (K, 1)
    n_batch = x_ref.shape[0]
    k_classes = wt.shape[0]

    for n in range(n_batch):            # static, tiny N
        xn = x_ref[n]                   # (C, T)
        # seg-model hot path: channel combine -> (K, T); result is lane-dense
        # in pixels, so every downstream vector op works on full 128-lane vregs.
        y = jnp.dot(wt, xn, preferred_element_type=jnp.float32) + b    # (K, T)

        # one_hot(argmax over classes) with first-max tie breaking, matching
        # torch.argmax / F.one_hot.  Classes live on the sublane axis (K=8).
        iota = lax.broadcasted_iota(jnp.int32, y.shape, dimension=0)    # (K, T)
        y_max = jnp.max(y, axis=0, keepdims=True)                       # (1, T)
        first_idx = jnp.min(
            jnp.where(y == y_max, iota, k_classes),
            axis=0, keepdims=True)                                      # (1, T)
        one_hot = iota == first_idx                                     # (K, T)

        # (A * y).sum over pixels: at the argmax y == y_max, so only y_max is
        # needed in the select (saves one full (K, T) read of y).
        col = jnp.sum(jnp.where(one_hot, y_max, 0.0),
                      axis=-1, keepdims=True)                           # (K, 1)
        acc_ref[:, pl.ds(n, 1)] += col      # tiny VMEM-scratch update only

    @pl.when(t == n_tiles - 1)
    def _finalize():
        o_ref[0] = acc_ref[...]             # single HBM store per split


def _pick_tile(hw, num_splits):
    for cand in (2048, 1024, 512, 256, 128):
        if hw % (cand * num_splits) == 0:
            return cand
    assert num_splits == 1, "H*W must be a multiple of 128*num_splits to split"
    return hw


def seg2cls_forward(x_nchw, w, b, *, tile_pixels=None, num_splits=1):
    """x_nchw: (N, C, H, W) f32; w: (C, K); b: (K,) -> (N, K) f32."""
    N, C, H, W = x_nchw.shape
    K = w.shape[1]
    HW = H * W

    if tile_pixels is None:
        tile_pixels = _pick_tile(HW, num_splits)
    assert HW % (tile_pixels * num_splits) == 0
    tiles_per_split = HW // (tile_pixels * num_splits)

    # Free re-layout: (N,C,H,W) -> (N,C,H*W).  No transpose, no extra HBM pass.
    x = x_nchw.reshape(N, C, HW)
    wt = jnp.transpose(w)               # (K, C), tiny
    b2 = b.reshape(K, 1)

    grid = (num_splits, tiles_per_split)
    parts = pl.pallas_call(
        seg2cls_kernel,
        out_shape=jax.ShapeDtypeStruct((num_splits, K, N), jnp.float32),
        grid_spec=pltpu.PrefetchScalarGridSpec(
            num_scalar_prefetch=0,
            grid=grid,
            in_specs=[
                # x tile: double-buffered size is 2*N*C*T*4 bytes (~32 KiB at
                # T=2048 for this C), far below scoped VMEM on v5e/v6e/v7x.
                pl.BlockSpec((N, C, tile_pixels),
                             lambda p, t: (0, 0, p * tiles_per_split + t)),
                pl.BlockSpec((K, C), lambda p, t: (0, 0)),
                pl.BlockSpec((K, 1), lambda p, t: (0, 0)),
            ],
            out_specs=pl.BlockSpec((1, K, N), lambda p, t: (p, 0, 0)),
            scratch_shapes=[pltpu.VMEM((K, N), jnp.float32)],
        ),
        compiler_params=pltpu.CompilerParams(
            # Split axis has independent partial outputs -> safe to run in
            # parallel across TensorCores; the pixel-tile axis is a reduction
            # into the VMEM accumulator -> arbitrary.
            dimension_semantics=("parallel", "arbitrary")),
    )(x, wt, b2)

    # (splits, K, N) -> (N, K): tiny glue on an (splits, 8, 2) array.
    return jnp.transpose(jnp.sum(parts, axis=0))


def reference(x_nchw, w, b):
    """Pure-JAX mirror of the PyTorch forward (for correctness check)."""
    K = w.shape[1]
    x = jnp.transpose(x_nchw, (0, 2, 3, 1))                     # (N,H,W,C)
    y = jnp.einsum('nhwc,ck->nkhw', x, w,
                   preferred_element_type=jnp.float32) + b[None, :, None, None]
    A = jnp.argmax(y, axis=1)                                   # (N,H,W)
    A = jnp.transpose(jax.nn.one_hot(A, K, dtype=y.dtype), (0, 3, 1, 2))
    return jnp.sum(A * y, axis=(2, 3))                          # (N,K)


if __name__ == "__main__":
    N, C, H, W, K = 2, 4, 16, 16, 8

    key = jax.random.PRNGKey(0)
    kx, kw, kb = jax.random.split(key, 3)
    x = jax.random.normal(kx, (N, C, H, W), dtype=jnp.float32)
    # Deterministic synthetic "seg model" parameters (1x1 conv: C -> K).
    w = jax.random.normal(kw, (C, K), dtype=jnp.float32) * 0.5
    b = jax.random.normal(kb, (K,), dtype=jnp.float32) * 0.1

    out = jax.block_until_ready(seg2cls_forward(x, w, b))
    ref = jax.block_until_ready(reference(x, w, b))

    assert out.shape == (N, K)
    assert jnp.allclose(out, ref, atol=1e-3, rtol=1e-4), (out, ref)

    print("KERNEL_OK")
</pallas_src>

<mosaic_0001>
module attributes {stable_mosaic.version = 11 : i64} {
  func.func @seg2cls_kernel(%arg0: i32, %arg1: i32, %arg2: memref<2x4x256xf32, #tpu.memory_space<vmem>>, %arg3: memref<8x4xf32, #tpu.memory_space<vmem>>, %arg4: memref<8x1xf32, #tpu.memory_space<vmem>>, %arg5: memref<1x8x2xf32, #tpu.memory_space<vmem>>, %arg6: memref<8x2xf32, #tpu.memory_space<vmem>>) attributes {dimension_semantics = [#tpu.dimension_semantics<parallel>, #tpu.dimension_semantics<arbitrary>], iteration_bounds = array<i64: 1, 1>, scalar_prefetch = 0 : i64, scratch_operands = 1 : i64, tpu.core_type = #tpu.core_type<tc>, window_params = [{transform_indices = @transform_0, window_bounds = array<i64: 2, 4, 256>}, {pipeline_mode = #tpu.pipeline_mode<synchronous>, transform_indices = @transform_1, window_bounds = array<i64: 8, 4>}, {pipeline_mode = #tpu.pipeline_mode<synchronous>, transform_indices = @transform_2, window_bounds = array<i64: 8, 1>}, {transform_indices = @transform_3, window_bounds = array<i64: 1, 8, 2>}]} {
    %c0_i32 = arith.constant 0 : i32
    %0 = arith.cmpi eq, %arg1, %c0_i32 : i32
    %1 = arith.extui %0 : i1 to i32
    %c0_i32_0 = arith.constant 0 : i32
    %2 = arith.cmpi ne, %1, %c0_i32_0 : i32
    scf.if %2 {
      %cst_29 = arith.constant 0.000000e+00 : f32
      %58 = vector.broadcast %cst_29 : f32 to vector<8x2xf32>
      %c0_30 = arith.constant 0 : index
      %c0_31 = arith.constant 0 : index
      %59 = vector.load %arg6[%c0_30, %c0_31] : memref<8x2xf32, #tpu.memory_space<vmem>>, vector<8x2xf32>
      tpu.vector_store %arg6[%c0_30, %c0_31], %58 {strides = array<i32>} : memref<8x2xf32, #tpu.memory_space<vmem>>, vector<8x2xf32>,
    } else {
    }
    %c0 = arith.constant 0 : index
    %c0_1 = arith.constant 0 : index
    %3 = vector.load %arg3[%c0, %c0_1] : memref<8x4xf32, #tpu.memory_space<vmem>>, vector<8x4xf32>
    %c0_2 = arith.constant 0 : index
    %c0_3 = arith.constant 0 : index
    %4 = vector.load %arg4[%c0_2, %c0_3] : memref<8x1xf32, #tpu.memory_space<vmem>>, vector<8x1xf32>
    %c0_4 = arith.constant 0 : index
    %c0_5 = arith.constant 0 : index
    %c0_6 = arith.constant 0 : index
    %5 = vector.load %arg2[%c0_4, %c0_5, %c0_6] : memref<2x4x256xf32, #tpu.memory_space<vmem>>, vector<1x4x256xf32>
    %6 = vector.shape_cast %5 : vector<1x4x256xf32> to vector<4x256xf32>
    %cst = arith.constant dense<0.000000e+00> : vector<8x256xf32>
    %7 = tpu.matmul %3, %6, %cst {dimension_numbers = #tpu.dot_dimension_numbers<[1], [0], [0], [1], [0, 0, 1, 1], [], []>} : vector<8x4xf32>, vector<4x256xf32>, vector<8x256xf32> -> vector<8x256xf32>
    %8 = vector.broadcast %4 : vector<8x1xf32> to vector<8x256xf32>
    %9 = arith.addf %7, %8 : vector<8x256xf32>
    %10 = tpu.iota {dimensions = array<i32: 0>} : vector<8x256xi32>
    %cst_7 = arith.constant dense<0xFF800000> : vector<256xf32>
    %11 = vector.multi_reduction <maximumf>, %9, %cst_7 [0] : vector<8x256xf32> to vector<256xf32>
    %12 = vector.shape_cast %11 : vector<256xf32> to vector<1x256xf32>
    %13 = vector.broadcast %12 : vector<1x256xf32> to vector<8x256xf32>
    %14 = arith.cmpf oeq, %9, %13 : vector<8x256xf32>
    %c8_i32 = arith.constant 8 : i32
    %15 = vector.broadcast %c8_i32 : i32 to vector<8x256xi32>
    %16 = arith.select %14, %10, %15 : vector<8x256xi1>, vector<8x256xi32>
    %cst_8 = arith.constant dense<2147483647> : vector<256xi32>
    %17 = vector.multi_reduction <minsi>, %16, %cst_8 [0] : vector<8x256xi32> to vector<256xi32>
    %18 = vector.shape_cast %17 : vector<256xi32> to vector<1x256xi32>
    %19 = vector.broadcast %18 : vector<1x256xi32> to vector<8x256xi32>
    %20 = arith.cmpi eq, %10, %19 : vector<8x256xi32>
    %cst_9 = arith.constant 0.000000e+00 : f32
    %21 = vector.shape_cast %12 : vector<1x256xf32> to vector<1x256xf32>
    %22 = vector.broadcast %21 : vector<1x256xf32> to vector<8x256xf32>
    %23 = vector.broadcast %cst_9 : f32 to vector<8x256xf32>
    %24 = arith.select %20, %22, %23 : vector<8x256xi1>, vector<8x256xf32>
    %cst_10 = arith.constant dense<0.000000e+00> : vector<8xf32>
    %25 = vector.multi_reduction <add>, %24, %cst_10 [1] : vector<8x256xf32> to vector<8xf32>
    %26 = vector.shape_cast %25 : vector<8xf32> to vector<8x1xf32>
    %c0_11 = arith.constant 0 : index
    %c0_12 = arith.constant 0 : index
    %27 = vector.load %arg6[%c0_11, %c0_12] : memref<8x2xf32, #tpu.memory_space<vmem>>, vector<8x1xf32>
    %28 = arith.addf %27, %26 : vector<8x1xf32>
    %c0_13 = arith.constant 0 : index
    %c0_14 = arith.constant 0 : index
    %29 = vector.load %arg6[%c0_13, %c0_14] : memref<8x2xf32, #tpu.memory_space<vmem>>, vector<8x1xf32>
    tpu.vector_store %arg6[%c0_13, %c0_14], %28 {strides = array<i32>} : memref<8x2xf32, #tpu.memory_space<vmem>>, vector<8x1xf32>,
    %c1 = arith.constant 1 : index
    %c0_15 = arith.constant 0 : index
    %c0_16 = arith.constant 0 : index
    %30 = vector.load %arg2[%c1, %c0_15, %c0_16] : memref<2x4x256xf32, #tpu.memory_space<vmem>>, vector<1x4x256xf32>
    %31 = vector.shape_cast %30 : vector<1x4x256xf32> to vector<4x256xf32>
    %cst_17 = arith.constant dense<0.000000e+00> : vector<8x256xf32>
    %32 = tpu.matmul %3, %31, %cst_17 {dimension_numbers = #tpu.dot_dimension_numbers<[1], [0], [0], [1], [0, 0, 1, 1], [], []>} : vector<8x4xf32>, vector<4x256xf32>, vector<8x256xf32> -> vector<8x256xf32>
    %33 = vector.broadcast %4 : vector<8x1xf32> to vector<8x256xf32>
    %34 = arith.addf %32, %33 : vector<8x256xf32>
    %35 = tpu.iota {dimensions = array<i32: 0>} : vector<8x256xi32>
    %cst_18 = arith.constant dense<0xFF800000> : vector<256xf32>
    %36 = vector.multi_reduction <maximumf>, %34, %cst_18 [0] : vector<8x256xf32> to vector<256xf32>
    %37 = vector.shape_cast %36 : vector<256xf32> to vector<1x256xf32>
    %38 = vector.broadcast %37 : vector<1x256xf32> to vector<8x256xf32>
    %39 = arith.cmpf oeq, %34, %38 : vector<8x256xf32>
    %c8_i32_19 = arith.constant 8 : i32
    %40 = vector.broadcast %c8_i32_19 : i32 to vector<8x256xi32>
    %41 = arith.select %39, %35, %40 : vector<8x256xi1>, vector<8x256xi32>
    %cst_20 = arith.constant dense<2147483647> : vector<256xi32>
    %42 = vector.multi_reduction <minsi>, %41, %cst_20 [0] : vector<8x256xi32> to vector<256xi32>
    %43 = vector.shape_cast %42 : vector<256xi32> to vector<1x256xi32>
    %44 = vector.broadcast %43 : vector<1x256xi32> to vector<8x256xi32>
    %45 = arith.cmpi eq, %35, %44 : vector<8x256xi32>
    %cst_21 = arith.constant 0.000000e+00 : f32
    %46 = vector.shape_cast %37 : vector<1x256xf32> to vector<1x256xf32>
    %47 = vector.broadcast %46 : vector<1x256xf32> to vector<8x256xf32>
    %48 = vector.broadcast %cst_21 : f32 to vector<8x256xf32>
    %49 = arith.select %45, %47, %48 : vector<8x256xi1>, vector<8x256xf32>
    %cst_22 = arith.constant dense<0.000000e+00> : vector<8xf32>
    %50 = vector.multi_reduction <add>, %49, %cst_22 [1] : vector<8x256xf32> to vector<8xf32>
    %51 = vector.shape_cast %50 : vector<8xf32> to vector<8x1xf32>
    %c0_23 = arith.constant 0 : index
    %c1_24 = arith.constant 1 : index
    %52 = vector.load %arg6[%c0_23, %c1_24] : memref<8x2xf32, #tpu.memory_space<vmem>>, vector<8x1xf32>
    %53 = arith.addf %52, %51 : vector<8x1xf32>
    %c0_25 = arith.constant 0 : index
    %c1_26 = arith.constant 1 : index
    %54 = vector.load %arg6[%c0_25, %c1_26] : memref<8x2xf32, #tpu.memory_space<vmem>>, vector<8x1xf32>
    tpu.vector_store %arg6[%c0_25, %c1_26], %53 {strides = array<i32>} : memref<8x2xf32, #tpu.memory_space<vmem>>, vector<8x1xf32>,
    %c0_i32_27 = arith.constant 0 : i32
    %55 = arith.cmpi eq, %arg1, %c0_i32_27 : i32
    %56 = arith.extui %55 : i1 to i32
    %c0_i32_28 = arith.constant 0 : i32
    %57 = arith.cmpi ne, %56, %c0_i32_28 : i32
    scf.if %57 {
      %c0_29 = arith.constant 0 : index
      %c0_30 = arith.constant 0 : index
      %58 = vector.load %arg6[%c0_29, %c0_30] : memref<8x2xf32, #tpu.memory_space<vmem>>, vector<8x2xf32>
      %c0_31 = arith.constant 0 : index
      %c0_32 = arith.constant 0 : index
      %c0_33 = arith.constant 0 : index
      %59 = vector.load %arg5[%c0_31, %c0_32, %c0_33] : memref<1x8x2xf32, #tpu.memory_space<vmem>>, vector<1x8x2xf32>
      %60 = vector.shape_cast %59 : vector<1x8x2xf32> to vector<8x2xf32>
      %61 = vector.shape_cast %58 : vector<8x2xf32> to vector<1x8x2xf32>
      tpu.vector_store %arg5[%c0_31, %c0_32, %c0_33], %61 {strides = array<i32>} : memref<1x8x2xf32, #tpu.memory_space<vmem>>, vector<1x8x2xf32>,
    } else {
    }
    return
  }
  func.func @transform_0(%arg0: i32, %arg1: i32) -> (i32, i32, i32) {
    %c1_i32 = arith.constant 1 : i32
    %0 = arith.muli %arg0, %c1_i32 : i32
    %1 = arith.addi %0, %arg1 : i32
    %c0_i32 = arith.constant 0 : i32
    %c0_i32_0 = arith.constant 0 : i32
    %c0_i32_1 = arith.constant 0 : i32
    return %c0_i32, %c0_i32_0, %1 : i32, i32, i32
  }
  func.func @transform_1(%arg0: i32, %arg1: i32) -> (i32, i32) {
    %c0_i32 = arith.constant 0 : i32
    %c0_i32_0 = arith.constant 0 : i32
    %c0_i32_1 = arith.constant 0 : i32
    return %c0_i32, %c0_i32_0 : i32, i32
  }
  func.func @transform_2(%arg0: i32, %arg1: i32) -> (i32, i32) {
    %c0_i32 = arith.constant 0 : i32
    %c0_i32_0 = arith.constant 0 : i32
    %c0_i32_1 = arith.constant 0 : i32
    return %c0_i32, %c0_i32_0 : i32, i32
  }
  func.func @transform_3(%arg0: i32, %arg1: i32) -> (i32, i32, i32) {
    %c0_i32 = arith.constant 0 : i32
    %c0_i32_0 = arith.constant 0 : i32
    %c0_i32_1 = arith.constant 0 : i32
    return %arg0, %c0_i32, %c0_i32_0 : i32, i32, i32
  }
}

</mosaic_0001>

<llo_original>
// kernel: tpu_custom_call.1
$region0: #{tpu_custom_call.1}
  #allocation0 [shape = 'u32[]', space=smem, size = 0x4, offset = 0x4, fixed_abs, tag = 'smem constant byte address 0x4 - core index']
  #allocation1 [shape = 'u32[144,128]{1,0:T(1,128)}', space=vmem, size = 0x12000, scoped, tag = 'internal scratch']
  #allocation2 [shape = 'f32[8,2]{1,0:T(8,128)}', space=vmem, size = 0x1000, scoped, tag = 'scratch operand']
  %s0 = inlined_call_operand.vmem [shape: f32[2,4,256], index: 0, kind: input, shape index: {}]
  %s1 = inlined_call_operand.vmem [shape: f32[8,4], index: 1, kind: input, shape index: {}]
  %s2 = inlined_call_operand.vmem [shape: f32[8,1], index: 2, kind: input, shape index: {}]
  %s3 = inlined_call_operand.vmem [shape: f32[1,8,2], index: 3, kind: output, shape index: {}]
  %s4 = sld [smem:[#allocation0]]
  $region30: #{tpu_custom_call.1} parent=0
    _
  %s6 = ssub.s32 1, %s4
  %s7 = scalar_select 0, %s6, %s4
  // Predicated region
  $region2: #{tpu_custom_call.1} parent=0 // pred_check
    _
  $region3: #{tpu_custom_call.1} parent=0 // pred_check_branch
    %9 = sbr.rel (0) target = $region5
  $region4: #{tpu_custom_call.1} parent=0 // pred_region
    %s10 = sadd.s32 0, 0
    %s11 = smul.u32 2, %s10
    %p12 = scmp.lt.s32.totalorder %s11, 1
    %s13 = scalar_select %p12, %s11, 1
    %s14 = smul.addr %s13, 4
    %s15 = scalar_lea.vmem %s0, %s14
    %s16 = sadd.s32 0, 0
    %s17 = smul.u32 2, %s16
  $region5: #{tpu_custom_call.1} parent=0 // pred_fallthru
    _
  // Predicated region
  $region6: #{tpu_custom_call.1} parent=0 // pred_check
    _
  $region7: #{tpu_custom_call.1} parent=0 // pred_check_branch
    %19 = sbr.rel (0) target = $region9
  $region8: #{tpu_custom_call.1} parent=0 // pred_region
    _
  $region9: #{tpu_custom_call.1} parent=0 // pred_fallthru
    _
  // Predicated region
  $region10: #{tpu_custom_call.1} parent=0 // pred_check
    _
  $region11: #{tpu_custom_call.1} parent=0 // pred_check_branch
    %21 = sbr.rel (0) target = $region13
  $region12: #{tpu_custom_call.1} parent=0 // pred_region
    _
  $region13: #{tpu_custom_call.1} parent=0 // pred_fallthru
    _
  %s22 = sadd.s32 0, 0
  %s23 = smul.u32 2, %s22
  %p24 = scmp.lt.s32.totalorder %s23, 1
  %s25 = scalar_select %p24, %s23, 1
  %s26 = smul.addr %s25, 4
  %s27 = scalar_lea.vmem %s0, %s26
  %s28 = sadd.s32 0, 0
  %s29 = smul.u32 2, %s28
  %p30 = scmp.lt.s32.totalorder %s29, 1
  %s31 = scalar_select %p30, %s29, 1
  %s32 = smul.addr %s31, 4
  %s33 = scalar_lea.vmem %s0, %s32
  %s34 = sadd.s32 0, 0
  %s35 = smul.u32 2, %s34
  %p36 = scmp.eq.s32.totalorder 0, 0
  // Predicated region
  $region14: #{tpu_custom_call.1} parent=0 // pred_check
    %p37 = pneg %p36
  $region15: #{tpu_custom_call.1} parent=0 // pred_check_branch
    %39 = sbr.rel (%p37) target = $region17
  $region16: #{tpu_custom_call.1} parent=0 // pred_region
    %vm40 = vcmask 15360
    %41 = vst.msk [vmem:[#allocation2] sm:$0xff] %vm40, 0.0
  $region17: #{tpu_custom_call.1} parent=0 // pred_fallthru
    _
  %v42 = vld [vmem:[%s1] sm:$0xff]
  %v43 = vld [vmem:[%s2] sm:$0xff]
  %v44 = vld [vmem:[%s33] sm:$0xff]
  %46 = vset.pattern.permute.xlu0 0
  %47 = vperm.xlu0 %46, %v43
  %v48 = vpop.permute.xlu0 %47
  %v51 = vcombine.high %v44, %v44
  %vm52 = vcmask 31744
  %v54 = vsel %vm52, %v42, 0
  %vm56 = vcmask 1043456
  %v57 = vsel %vm56, %v44, 0
  %v59 = vsel %vm56, %v51, 0
  %61 = vmatprep.subr.mxu0 %v59
  %62 = vmatpush1.msra.mxu0 %v57
  %63 = vmatprep.subr.mxu0 0.0
  %64 = vmatpush1.msra.mxu0 0.0
  %65 = vmatprep.subr.mxu0 0.0
  %66 = vmatpush1.msra.mxu0 0.0
  %67 = vmatprep.subr.mxu0 0.0
  %68 = vmatpush1.msra.mxu0 0.0
  %69 = vmatprep.subr.mxu0 0.0
  %70 = vmatpush1.msra.mxu0 0.0
  %71 = vmatprep.subr.mxu0 0.0
  %72 = vmatpush1.msra.mxu0 0.0
  %73 = vmatprep.subr.mxu0 0.0
  %74 = vmatpush1.msra.mxu0 0.0
  %75 = vmatprep.subr.mxu0 0.0
  %76 = vmatpush1.msra.mxu0 0.0
  %77 = vmatprep.subr.mxu0 0.0
  %78 = vmatpush1.msra.mxu0 0.0
  %79 = vmatprep.subr.mxu0 0.0
  %80 = vmatpush1.msra.mxu0 0.0
  %81 = vmatprep.subr.mxu0 0.0
  %82 = vmatpush1.msra.mxu0 0.0
  %83 = vmatprep.subr.mxu0 0.0
  %84 = vmatpush1.msra.mxu0 0.0
  %85 = vmatprep.subr.mxu0 0.0
  %86 = vmatpush1.msra.mxu0 0.0
  %87 = vmatprep.subr.mxu0 0.0
  %88 = vmatpush1.msra.mxu0 0.0
  %89 = vmatprep.subr.mxu0 0.0
  %90 = vmatpush1.msra.mxu0 0.0
  %91 = vmatprep.subr.mxu0 0.0
  %92 = vmatpush1.msra.mxu0 0.0
  %93 = vmatprep.subr.mxu0 0.0
  %94 = vmatpush1.msra.mxu0 0.0
  %95 = vmatprep.subr.mxu0 0.0
  %96 = vmatpush1.msra.mxu0 0.0
  %97 = vmatprep.subr.mxu0 0.0
  %98 = vmatpush1.msra.mxu0 0.0
  %99 = vmatprep.subr.mxu0 0.0
  %100 = vmatpush1.msra.mxu0 0.0
  %101 = vmatprep.subr.mxu0 0.0
  %102 = vmatpush1.msra.mxu0 0.0
  %103 = vmatprep.subr.mxu0 0.0
  %104 = vmatpush1.msra.mxu0 0.0
  %105 = vmatprep.subr.mxu0 0.0
  %106 = vmatpush1.msra.mxu0 0.0
  %107 = vmatprep.subr.mxu0 0.0
  %108 = vmatpush1.msra.mxu0 0.0
  %109 = vmatprep.subr.mxu0 0.0
  %110 = vmatpush1.msra.mxu0 0.0
  %111 = vmatprep.subr.mxu0 0.0
  %112 = vmatpush1.msra.mxu0 0.0
  %113 = vmatprep.subr.mxu0 0.0
  %114 = vmatpush1.msra.mxu0 0.0
  %115 = vmatprep.subr.mxu0 0.0
  %116 = vmatpush1.msra.mxu0 0.0
  %117 = vmatprep.subr.mxu0 0.0
  %118 = vmatpush1.msra.mxu0 0.0
  %119 = vmatprep.subr.mxu0 0.0
  %120 = vmatpush1.msra.mxu0 0.0
  %121 = vmatprep.subr.mxu0 0.0
  %122 = vmatpush1.msra.mxu0 0.0
  %123 = vmatprep.subr.mxu0 0.0
  %124 = vmatpush1.msra.mxu0 0.0
  %125 = vmatprep.mubr.f32.mxu0 0.0
  %126 = vmatmul.mubr.f32.gmra.mrb[0].mxu0 %v54
  %v127 = vpop.f32.mrb[0].mxu0
  %v128 = vadd.f32 %v48, %v127
  %v129 = vpop.f32.mrb[0].mxu0
  %v130 = vadd.f32 %v48, %v129
  %131 = vdwg.mxu0
  %v132 = vlaneseq
  %v133 = vshrl.u32 %v132, 7
  %v134 = vrot.slane %v128, 4
  %v135 = vmax.f32 %v128, %v134
  %v136 = vrot.slane %v135, 2
  %v137 = vmax.f32 %v135, %v136
  %v138 = vrot.slane %v137, 1
  %v139 = vmax.f32 %v137, %v138
  %v140 = vrot.slane %v130, 4
  %v141 = vmax.f32 %v130, %v140
  %v142 = vrot.slane %v141, 2
  %v143 = vmax.f32 %v141, %v142
  %v144 = vrot.slane %v143, 1
  %v145 = vmax.f32 %v143, %v144
  %vm146 = vcmp.eq.f32.partialorder %v128, %v139
  %vm147 = vcmp.eq.f32.partialorder %v130, %v145
  %v148 = vsel %vm146, %v133, 8
  %v149 = vsel %vm147, %v133, 8
  %v150 = vrot.slane %v148, 4
  %vm151 = vcmp.lt.s32.totalorder %v148, %v150
  %v152 = vsel %vm151, %v148, %v150
  %v153 = vrot.slane %v152, 2
  %vm154 = vcmp.lt.s32.totalorder %v152, %v153
  %v155 = vsel %vm154, %v152, %v153
  %v156 = vrot.slane %v155, 1
  %vm157 = vcmp.lt.s32.totalorder %v155, %v156
  %v158 = vsel %vm157, %v155, %v156
  %v159 = vrot.slane %v149, 4
  %vm160 = vcmp.lt.s32.totalorder %v149, %v159
  %v161 = vsel %vm160, %v149, %v159
  %v162 = vrot.slane %v161, 2
  %vm163 = vcmp.lt.s32.totalorder %v161, %v162
  %v164 = vsel %vm163, %v161, %v162
  %v165 = vrot.slane %v164, 1
  %vm166 = vcmp.lt.s32.totalorder %v164, %v165
  %v167 = vsel %vm166, %v164, %v165
  %vm168 = vcmp.eq.s32.totalorder %v133, %v158
  %vm169 = vcmp.eq.s32.totalorder %v133, %v167
  %v170 = vsel %vm168, %v139, 0.0
  %v171 = vsel %vm169, %v145, 0.0
  %v172 = vadd.f32 %v170, %v171
  %173 = vadd.xlane.f32.xlu0 %v172
  %v174 = vpop.xlane.xlu0 %173
  %v175 = vld [vmem:[#allocation2] sm:$0xff]
  %v176 = vadd.f32 %v175, %v174
  %vm177 = vcmask 7168
  %178 = vst.msk [vmem:[#allocation2] sm:$0xff] %vm177, %v176
  %s179 = scalar_lea.vmem %s33, 8
  %v180 = vld [vmem:[%s179] sm:$0xff]
  %v182 = vcombine.high %v180, %v180
  %v183 = vsel %vm56, %v180, 0
  %v185 = vsel %vm56, %v182, 0
  %187 = vmatprep.subr.mxu0 %v185
  %188 = vmatpush1.msra.mxu0 %v183
  %189 = vmatprep.subr.mxu0 0.0
  %190 = vmatpush1.msra.mxu0 0.0
  %191 = vmatprep.subr.mxu0 0.0
  %192 = vmatpush1.msra.mxu0 0.0
  %193 = vmatprep.subr.mxu0 0.0
  %194 = vmatpush1.msra.mxu0 0.0
  %195 = vmatprep.subr.mxu0 0.0
  %196 = vmatpush1.msra.mxu0 0.0
  %197 = vmatprep.subr.mxu0 0.0
  %198 = vmatpush1.msra.mxu0 0.0
  %199 = vmatprep.subr.mxu0 0.0
  %200 = vmatpush1.msra.mxu0 0.0
  %201 = vmatprep.subr.mxu0 0.0
  %202 = vmatpush1.msra.mxu0 0.0
  %203 = vmatprep.subr.mxu0 0.0
  %204 = vmatpush1.msra.mxu0 0.0
  %205 = vmatprep.subr.mxu0 0.0
  %206 = vmatpush1.msra.mxu0 0.0
  %207 = vmatprep.subr.mxu0 0.0
  %208 = vmatpush1.msra.mxu0 0.0
  %209 = vmatprep.subr.mxu0 0.0
  %210 = vmatpush1.msra.mxu0 0.0
  %211 = vmatprep.subr.mxu0 0.0
  %212 = vmatpush1.msra.mxu0 0.0
  %213 = vmatprep.subr.mxu0 0.0
  %214 = vmatpush1.msra.mxu0 0.0
  %215 = vmatprep.subr.mxu0 0.0
  %216 = vmatpush1.msra.mxu0 0.0
  %217 = vmatprep.subr.mxu0 0.0
  %218 = vmatpush1.msra.mxu0 0.0
  %219 = vmatprep.subr.mxu0 0.0
  %220 = vmatpush1.msra.mxu0 0.0
  %221 = vmatprep.subr.mxu0 0.0
  %222 = vmatpush1.msra.mxu0 0.0
  %223 = vmatprep.subr.mxu0 0.0
  %224 = vmatpush1.msra.mxu0 0.0
  %225 = vmatprep.subr.mxu0 0.0
  %226 = vmatpush1.msra.mxu0 0.0
  %227 = vmatprep.subr.mxu0 0.0
  %228 = vmatpush1.msra.mxu0 0.0
  %229 = vmatprep.subr.mxu0 0.0
  %230 = vmatpush1.msra.mxu0 0.0
  %231 = vmatprep.subr.mxu0 0.0
  %232 = vmatpush1.msra.mxu0 0.0
  %233 = vmatprep.subr.mxu0 0.0
  %234 = vmatpush1.msra.mxu0 0.0
  %235 = vmatprep.subr.mxu0 0.0
  %236 = vmatpush1.msra.mxu0 0.0
  %237 = vmatprep.subr.mxu0 0.0
  %238 = vmatpush1.msra.mxu0 0.0
  %239 = vmatprep.subr.mxu0 0.0
  %240 = vmatpush1.msra.mxu0 0.0
  %241 = vmatprep.subr.mxu0 0.0
  %242 = vmatpush1.msra.mxu0 0.0
  %243 = vmatprep.subr.mxu0 0.0
  %244 = vmatpush1.msra.mxu0 0.0
  %245 = vmatprep.subr.mxu0 0.0
  %246 = vmatpush1.msra.mxu0 0.0
  %247 = vmatprep.subr.mxu0 0.0
  %248 = vmatpush1.msra.mxu0 0.0
  %249 = vmatprep.subr.mxu0 0.0
  %250 = vmatpush1.msra.mxu0 0.0
  %251 = vmatprep.mubr.f32.mxu0 0.0
  %252 = vmatmul.mubr.f32.gmra.mrb[0].mxu0 %v54
  %v253 = vpop.f32.mrb[0].mxu0
  %v254 = vadd.f32 %v48, %v253
  %v255 = vpop.f32.mrb[0].mxu0
  %v256 = vadd.f32 %v48, %v255
  %257 = vdwg.mxu0
  %v258 = vrot.slane %v254, 4
  %v259 = vmax.f32 %v254, %v258
  %v260 = vrot.slane %v259, 2
  %v261 = vmax.f32 %v259, %v260
  %v262 = vrot.slane %v261, 1
  %v263 = vmax.f32 %v261, %v262
  %v264 = vrot.slane %v256, 4
  %v265 = vmax.f32 %v256, %v264
  %v266 = vrot.slane %v265, 2
  %v267 = vmax.f32 %v265, %v266
  %v268 = vrot.slane %v267, 1
  %v269 = vmax.f32 %v267, %v268
  %vm270 = vcmp.eq.f32.partialorder %v254, %v263
  %vm271 = vcmp.eq.f32.partialorder %v256, %v269
  %v272 = vsel %vm270, %v133, 8
  %v273 = vsel %vm271, %v133, 8
  %v274 = vrot.slane %v272, 4
  %vm275 = vcmp.lt.s32.totalorder %v272, %v274
  %v276 = vsel %vm275, %v272, %v274
  %v277 = vrot.slane %v276, 2
  %vm278 = vcmp.lt.s32.totalorder %v276, %v277
  %v279 = vsel %vm278, %v276, %v277
  %v280 = vrot.slane %v279, 1
  %vm281 = vcmp.lt.s32.totalorder %v279, %v280
  %v282 = vsel %vm281, %v279, %v280
  %v283 = vrot.slane %v273, 4
  %vm284 = vcmp.lt.s32.totalorder %v273, %v283
  %v285 = vsel %vm284, %v273, %v283
  %v286 = vrot.slane %v285, 2
  %vm287 = vcmp.lt.s32.totalorder %v285, %v286
  %v288 = vsel %vm287, %v285, %v286
  %v289 = vrot.slane %v288, 1
  %vm290 = vcmp.lt.s32.totalorder %v288, %v289
  %v291 = vsel %vm290, %v288, %v289
  %vm292 = vcmp.eq.s32.totalorder %v133, %v282
  %vm293 = vcmp.eq.s32.totalorder %v133, %v291
  %v294 = vsel %vm292, %v263, 0.0
  %v295 = vsel %vm293, %v269, 0.0
  %v296 = vadd.f32 %v294, %v295
  %297 = vadd.xlane.f32.xlu0 %v296
  %v298 = vpop.xlane.xlu0 %297
  %v299 = vld [vmem:[#allocation2] sm:$0xff]
  %v300 = vadd.f32 %v299, %v298
  %vm301 = vcmask 15368
  %302 = vst.msk [vmem:[#allocation2] sm:$0xff] %vm301, %v300
  // Predicated region
  $region18: #{tpu_custom_call.1} parent=0 // pred_check
    %p303 = pneg %p36
  $region19: #{tpu_custom_call.1} parent=0 // pred_check_branch
    %305 = sbr.rel (%p303) target = $region21
  $region20: #{tpu_custom_call.1} parent=0 // pred_region
    %v306 = vld [vmem:[#allocation2] sm:$0xff]
    %vm307 = vcmask 15360
    %308 = vst.msk [vmem:[%s3] sm:$0xff] %vm307, %v306
  $region21: #{tpu_custom_call.1} parent=0 // pred_fallthru
    _
  // Predicated region
  $region22: #{tpu_custom_call.1} parent=0 // pred_check
    _
  $region23: #{tpu_custom_call.1} parent=0 // pred_check_branch
    %310 = sbr.rel (0) target = $region25
  $region24: #{tpu_custom_call.1} parent=0 // pred_region
    _
  $region25: #{tpu_custom_call.1} parent=0 // pred_fallthru
    _
  // Predicated region
  $region26: #{tpu_custom_call.1} parent=0 // pred_check
    _
  $region27: #{tpu_custom_call.1} parent=0 // pred_check_branch
    %312 = sbr.rel (0) target = $region29
  $region28: #{tpu_custom_call.1} parent=0 // pred_region
    _
  $region29: #{tpu_custom_call.1} parent=0 // pred_fallthru
    _

</llo_original>
